<compile_context>
chip_gen: v7x
topology: tpu7x:2x2x1
jax: 0.10.0
libtpu: 0.0.40
codegen_flags: <defaults>
</compile_context>

<pallas_src>
import functools

import numpy as np
import jax
import jax.numpy as jnp
from jax import lax
from jax.experimental import pallas as pl
from jax.experimental.pallas import tpu as pltpu

BN_EPS = 1e-5          # python floats: inlined as literals
KNN_K = 3
BIG = 1e30
LANE = 128


def _round_up(x, m):
    return ((x + m - 1) // m) * m


# ----------------------------------------------------------------------------
# Kernel 1: fused Linear + BatchNorm1d (train-mode batch stats) + optional ReLU.
# Grid is tiled over 128-wide output-channel tiles; BN statistics are exact because the
# full point dimension P stays resident per tile.
# ----------------------------------------------------------------------------
def _linear_bn_kernel(x_ref, w_ref, b_ref, g_ref, beta_ref, o_ref, *, relu):
    y = jnp.dot(x_ref[...], w_ref[...], preferred_element_type=jnp.float32)  # [P, 128]
    y = y + b_ref[...]
    mean = jnp.mean(y, axis=0, keepdims=True)
    var = jnp.mean((y - mean) ** 2, axis=0, keepdims=True)
    y = (y - mean) / jnp.sqrt(var + BN_EPS)
    y = y * g_ref[...] + beta_ref[...]
    if relu:
        y = jnp.maximum(y, 0.0)
    o_ref[...] = y.astype(o_ref.dtype)


def linear_bn(x, w, b, gamma, beta, *, relu):
    """x: [P, Cin]; w: [Cin, Cout_pad] (Cout_pad % 128 == 0); b/gamma/beta: [Cout_pad]."""
    P, Cin = x.shape
    Cout = w.shape[1]
    assert Cout % LANE == 0
    kern = functools.partial(_linear_bn_kernel, relu=relu)
    return pl.pallas_call(
        kern,
        out_shape=jax.ShapeDtypeStruct((P, Cout), jnp.float32),
        grid=(Cout // LANE,),
        in_specs=[
            pl.BlockSpec((P, Cin), lambda j: (0, 0)),
            pl.BlockSpec((Cin, LANE), lambda j: (0, j)),
            pl.BlockSpec((1, LANE), lambda j: (0, j)),
            pl.BlockSpec((1, LANE), lambda j: (0, j)),
            pl.BlockSpec((1, LANE), lambda j: (0, j)),
        ],
        out_specs=pl.BlockSpec((P, LANE), lambda j: (0, j)),
        compiler_params=pltpu.CompilerParams(dimension_semantics=("parallel",)),
    )(x, w, b.reshape(1, -1), gamma.reshape(1, -1), beta.reshape(1, -1))


# ----------------------------------------------------------------------------
# Kernel 2: knn(3) + inverse-distance interpolation + skip add + ReLU.
# Grid tiled over query points; reference cloud (xyz2/feat2, lane-padded) resident per step.
# ----------------------------------------------------------------------------
def _interp_kernel(xyz1_ref, b1_ref, xyz2t_ref, b2_ref, feat2_ref, skip_ref, o_ref):
    q = xyz1_ref[...]                                    # [tN, 3]
    p_t = xyz2t_ref[...]                                 # [3, S]
    tN = q.shape[0]
    S = p_t.shape[1]

    # exact squared pairwise distances (difference form, matches the reference's math
    # and avoids the |q|^2+|p|^2-2qp cancellation error on near neighbours)
    d = jnp.zeros((tN, S), jnp.float32)
    for c in range(3):
        diff = q[:, c:c + 1] - p_t[c:c + 1, :]           # [tN,1] - [1,S] -> [tN,S]
        d = d + diff * diff

    same = b1_ref[...] == b2_ref[...]                    # int32 compare, [tN,1] vs [1,S]
    d = jnp.where(same, d, BIG)

    col = lax.broadcasted_iota(jnp.int32, (tN, S), 1)
    wmat = jnp.zeros((tN, S), jnp.float32)               # unnormalized scattered knn weights
    wsum = jnp.zeros((tN, 1), jnp.float32)
    for _ in range(KNN_K):
        dmin = jnp.min(d, axis=-1, keepdims=True)        # [tN,1]
        # lowest-index tie-break (matches lax.top_k / pointops ordering)
        idxk = jnp.min(jnp.where(d <= dmin, col, S), axis=-1, keepdims=True)
        sel = col == idxk
        wk = 1.0 / (jnp.sqrt(dmin) + 1e-8)
        wmat = wmat + jnp.where(sel, wk, 0.0)
        wsum = wsum + wk
        d = jnp.where(sel, BIG, d)                       # exclude for next round

    interp = jnp.dot(wmat, feat2_ref[...], preferred_element_type=jnp.float32)  # [tN, D]
    interp = interp / wsum                               # exact normalization after the matmul
    o_ref[...] = jnp.maximum(interp + skip_ref[...], 0.0).astype(o_ref.dtype)


def interpolate(xyz1, bid1, xyz2, bid2, feat2, skip, *, tile_n=256):
    """xyz1:[N,3] xyz2:[S,3] bid*: int32 [N]/[S]; feat2:[S,D] skip:[N,D] with D % 128 == 0."""
    N = xyz1.shape[0]
    S, D = feat2.shape
    assert D % LANE == 0

    tile_n = max(8, min(tile_n, _round_up(N, 8)))        # keep a multiple of 8
    N_pad = _round_up(N, tile_n)
    S_pad = _round_up(S, LANE)                           # lane-dense [tN, S] distance matrix

    xyz1_p = jnp.pad(xyz1, ((0, N_pad - N), (0, 0)))
    bid1_p = jnp.pad(bid1, (0, N_pad - N), constant_values=-1).reshape(N_pad, 1)
    skip_p = jnp.pad(skip, ((0, N_pad - N), (0, 0)))
    xyz2_t = jnp.transpose(jnp.pad(xyz2, ((0, S_pad - S), (0, 0))))        # [3, S_pad]
    bid2_p = jnp.pad(bid2, (0, S_pad - S), constant_values=-2).reshape(1, S_pad)
    feat2_p = jnp.pad(feat2, ((0, S_pad - S), (0, 0)))

    out = pl.pallas_call(
        _interp_kernel,
        out_shape=jax.ShapeDtypeStruct((N_pad, D), jnp.float32),
        grid=(N_pad // tile_n,),
        in_specs=[
            pl.BlockSpec((tile_n, 3), lambda i: (i, 0)),
            pl.BlockSpec((tile_n, 1), lambda i: (i, 0)),
            pl.BlockSpec((3, S_pad), lambda i: (0, 0)),
            pl.BlockSpec((1, S_pad), lambda i: (0, 0)),
            pl.BlockSpec((S_pad, D), lambda i: (0, 0)),
            pl.BlockSpec((tile_n, D), lambda i: (i, 0)),
        ],
        out_specs=pl.BlockSpec((tile_n, D), lambda i: (i, 0)),
        compiler_params=pltpu.CompilerParams(dimension_semantics=("parallel",)),
    )(xyz1_p, bid1_p, xyz2_t, bid2_p, feat2_p, skip_p)
    return out[:N]                                       # keep channels lane-padded downstream


# ----------------------------------------------------------------------------
# Module
# ----------------------------------------------------------------------------
def offsets_to_batch_ids(offsets):
    # TODO(synk): static (numpy) offsets only; traced offsets would need an in-kernel search.
    offsets = np.asarray(offsets)
    counts = np.diff(np.concatenate([[0], offsets]))
    return np.repeat(np.arange(len(offsets)), counts).astype(np.int32)


def _pad_w(w, cin_pad, cout_pad):
    cin, cout = w.shape
    return jnp.pad(w, ((0, cin_pad - cin), (0, cout_pad - cout)))


def _pad_ones(g, cout_pad):
    return jnp.pad(g, (0, cout_pad - g.shape[0]), constant_values=1.0)


def _pad_zeros(b, cout_pad):
    return jnp.pad(b, (0, cout_pad - b.shape[0]))


class PointNetFeaturePropagationCN2Pallas:
    def __init__(self, prev_channel, skip_channel, mlp, key):
        self.skip = skip_channel is not None
        self.mlp = list(mlp)
        keys = jax.random.split(key, 4 + 2 * len(mlp))

        def lin(k, cin, cout):
            kw, kb = jax.random.split(k)
            w = 0.1 * jax.random.normal(kw, (cin, cout), jnp.float32)
            b = 0.1 * jax.random.normal(kb, (cout,), jnp.float32)
            return w, b

        def bn(k, c):
            kg, kb = jax.random.split(k)
            g = 1.0 + 0.1 * jax.random.normal(kg, (c,), jnp.float32)
            be = 0.1 * jax.random.normal(kb, (c,), jnp.float32)
            return g, be

        self.f0 = lin(keys[0], prev_channel, mlp[0]) + bn(keys[1], mlp[0])
        if self.skip:
            self.s0 = lin(keys[2], skip_channel, mlp[0]) + bn(keys[3], mlp[0])
        self.layers = []
        last = mlp[0]
        for i, c in enumerate(mlp[1:]):
            self.layers.append(lin(keys[4 + 2 * i], last, c) + bn(keys[5 + 2 * i], c))
            last = c

    def __call__(self, pos_feat_off1, pos_feat_off2):
        xyz1, points1, off1 = pos_feat_off1
        xyz2, points2, off2 = pos_feat_off2
        N = xyz1.shape[0]
        bid1 = jnp.asarray(offsets_to_batch_ids(off1))
        bid2 = jnp.asarray(offsets_to_batch_ids(off2))

        d0_pad = _round_up(self.mlp[0], LANE)

        # feat2 = norm_f0(mlp_f0(points2))
        wf, bf, gf, betaf = self.f0
        feat2 = linear_bn(points2, _pad_w(wf, wf.shape[0], d0_pad), _pad_zeros(bf, d0_pad),
                          _pad_ones(gf, d0_pad), _pad_zeros(betaf, d0_pad), relu=False)

        if self.skip:
            ws, bs, gs, betas = self.s0
            skip = linear_bn(points1, _pad_w(ws, ws.shape[0], d0_pad), _pad_zeros(bs, d0_pad),
                             _pad_ones(gs, d0_pad), _pad_zeros(betas, d0_pad), relu=False)
        else:
            skip = jnp.zeros((N, d0_pad), jnp.float32)

        new_points = interpolate(xyz1, bid1, xyz2, bid2, feat2, skip)   # [N, d0_pad]

        last_pad = d0_pad
        last_c = self.mlp[0]
        for (w, b, g, be), c in zip(self.layers, self.mlp[1:]):
            c_pad = _round_up(c, LANE)
            new_points = linear_bn(new_points, _pad_w(w, last_pad, c_pad), _pad_zeros(b, c_pad),
                                   _pad_ones(g, c_pad), _pad_zeros(be, c_pad), relu=True)
            last_pad, last_c = c_pad, c
        return new_points[:, :last_c]

    # pure-JAX reference (PyTorch forward semantics, train-mode BN)
    def reference(self, pos_feat_off1, pos_feat_off2):
        xyz1, points1, off1 = pos_feat_off1
        xyz2, points2, off2 = pos_feat_off2
        bid1 = jnp.asarray(offsets_to_batch_ids(off1))
        bid2 = jnp.asarray(offsets_to_batch_ids(off2))

        d = jnp.sum((xyz1[:, None, :] - xyz2[None, :, :]) ** 2, axis=-1)
        d = jnp.where(bid1[:, None] == bid2[None, :], d, 1e30)
        negd, idx = lax.top_k(-d, KNN_K)
        dist = jnp.sqrt(jnp.maximum(-negd, 0.0))
        recip = 1.0 / (dist + 1e-8)
        weight = recip / jnp.sum(recip, axis=1, keepdims=True)

        def lbn(x, w, b, g, be, relu):
            y = jnp.dot(x, w, precision=lax.Precision.HIGHEST) + b
            m = jnp.mean(y, axis=0, keepdims=True)
            v = jnp.mean((y - m) ** 2, axis=0, keepdims=True)
            y = (y - m) / jnp.sqrt(v + BN_EPS) * g + be
            return jnp.maximum(y, 0.0) if relu else y

        wf, bf, gf, betaf = self.f0
        f2 = lbn(points2, wf, bf, gf, betaf, False)
        interp = jnp.zeros((xyz1.shape[0], f2.shape[1]), jnp.float32)
        for i in range(KNN_K):
            interp = interp + f2[idx[:, i]] * weight[:, i:i + 1]
        if self.skip:
            ws, bs, gs, betas = self.s0
            new = jnp.maximum(interp + lbn(points1, ws, bs, gs, betas, False), 0.0)
        else:
            new = jnp.maximum(interp, 0.0)
        for (w, b, g, be) in self.layers:
            new = lbn(new, w, b, g, be, True)
        return new


if __name__ == "__main__":
    key = jax.random.PRNGKey(0)
    k1, k2, k3, k4, kp = jax.random.split(key, 5)

    # small synthetic point clouds: 2 batch segments
    N, S = 64, 32
    prev_channel, skip_channel = 16, 8
    mlp = [32, 64]
    offset1 = np.array([32, 64], dtype=np.int32)   # cumulative counts for xyz1/points1
    offset2 = np.array([16, 32], dtype=np.int32)   # cumulative counts for xyz2/points2

    xyz1 = jax.random.uniform(k1, (N, 3), jnp.float32)
    xyz2 = jax.random.uniform(k2, (S, 3), jnp.float32)
    points1 = jax.random.normal(k3, (N, skip_channel), jnp.float32)
    points2 = jax.random.normal(k4, (S, prev_channel), jnp.float32)

    model = PointNetFeaturePropagationCN2Pallas(prev_channel, skip_channel, mlp, kp)

    out = model((xyz1, points1, offset1), (xyz2, points2, offset2))
    out = jax.block_until_ready(out)

    ref = model.reference((xyz1, points1, offset1), (xyz2, points2, offset2))
    np.testing.assert_allclose(np.asarray(out), np.asarray(ref), atol=2e-3, rtol=2e-3)

    print("KERNEL_OK")
</pallas_src>

<mosaic_0001>
module attributes {stable_mosaic.version = 11 : i64} {
  func.func @_linear_bn_kernel(%arg0: i32, %arg1: memref<32x16xf32, #tpu.memory_space<vmem>>, %arg2: memref<16x128xf32, #tpu.memory_space<vmem>>, %arg3: memref<1x128xf32, #tpu.memory_space<vmem>>, %arg4: memref<1x128xf32, #tpu.memory_space<vmem>>, %arg5: memref<1x128xf32, #tpu.memory_space<vmem>>, %arg6: memref<32x128xf32, #tpu.memory_space<vmem>>) attributes {dimension_semantics = [#tpu.dimension_semantics<parallel>], iteration_bounds = array<i64: 1>, scalar_prefetch = 0 : i64, scratch_operands = 0 : i64, tpu.core_type = #tpu.core_type<tc>, window_params = [{pipeline_mode = #tpu.pipeline_mode<synchronous>, transform_indices = @transform_0, window_bounds = array<i64: 32, 16>}, {transform_indices = @transform_1, window_bounds = array<i64: 16, 128>}, {transform_indices = @transform_2, window_bounds = array<i64: 1, 128>}, {transform_indices = @transform_3, window_bounds = array<i64: 1, 128>}, {transform_indices = @transform_4, window_bounds = array<i64: 1, 128>}, {transform_indices = @transform_5, window_bounds = array<i64: 32, 128>}]} {
    %c0 = arith.constant 0 : index
    %c0_0 = arith.constant 0 : index
    %0 = vector.load %arg1[%c0, %c0_0] : memref<32x16xf32, #tpu.memory_space<vmem>>, vector<32x16xf32>
    %c0_1 = arith.constant 0 : index
    %c0_2 = arith.constant 0 : index
    %1 = vector.load %arg2[%c0_1, %c0_2] : memref<16x128xf32, #tpu.memory_space<vmem>>, vector<16x128xf32>
    %cst = arith.constant dense<0.000000e+00> : vector<32x128xf32>
    %2 = tpu.matmul %0, %1, %cst {dimension_numbers = #tpu.dot_dimension_numbers<[1], [0], [0], [1], [0, 0, 1, 1], [], []>} : vector<32x16xf32>, vector<16x128xf32>, vector<32x128xf32> -> vector<32x128xf32>
    %c0_3 = arith.constant 0 : index
    %c0_4 = arith.constant 0 : index
    %3 = vector.load %arg3[%c0_3, %c0_4] : memref<1x128xf32, #tpu.memory_space<vmem>>, vector<1x128xf32>
    %4 = vector.broadcast %3 : vector<1x128xf32> to vector<32x128xf32>
    %5 = arith.addf %2, %4 : vector<32x128xf32>
    %cst_5 = arith.constant dense<0.000000e+00> : vector<128xf32>
    %6 = vector.multi_reduction <add>, %5, %cst_5 [0] : vector<32x128xf32> to vector<128xf32>
    %7 = vector.shape_cast %6 : vector<128xf32> to vector<1x128xf32>
    %cst_6 = arith.constant 3.200000e+01 : f32
    %8 = vector.broadcast %cst_6 : f32 to vector<1x128xf32>
    %9 = arith.divf %7, %8 : vector<1x128xf32>
    %10 = vector.broadcast %9 : vector<1x128xf32> to vector<32x128xf32>
    %11 = arith.subf %5, %10 : vector<32x128xf32>
    %12 = arith.mulf %11, %11 : vector<32x128xf32>
    %cst_7 = arith.constant dense<0.000000e+00> : vector<128xf32>
    %13 = vector.multi_reduction <add>, %12, %cst_7 [0] : vector<32x128xf32> to vector<128xf32>
    %14 = vector.shape_cast %13 : vector<128xf32> to vector<1x128xf32>
    %cst_8 = arith.constant 3.200000e+01 : f32
    %15 = vector.broadcast %cst_8 : f32 to vector<1x128xf32>
    %16 = arith.divf %14, %15 : vector<1x128xf32>
    %17 = vector.broadcast %9 : vector<1x128xf32> to vector<32x128xf32>
    %18 = arith.subf %5, %17 : vector<32x128xf32>
    %cst_9 = arith.constant 9.99999974E-6 : f32
    %19 = vector.broadcast %cst_9 : f32 to vector<1x128xf32>
    %20 = arith.addf %16, %19 : vector<1x128xf32>
    %21 = math.sqrt %20 : vector<1x128xf32>
    %22 = vector.broadcast %21 : vector<1x128xf32> to vector<32x128xf32>
    %23 = arith.divf %18, %22 : vector<32x128xf32>
    %c0_10 = arith.constant 0 : index
    %c0_11 = arith.constant 0 : index
    %24 = vector.load %arg4[%c0_10, %c0_11] : memref<1x128xf32, #tpu.memory_space<vmem>>, vector<1x128xf32>
    %25 = vector.broadcast %24 : vector<1x128xf32> to vector<32x128xf32>
    %26 = arith.mulf %23, %25 : vector<32x128xf32>
    %c0_12 = arith.constant 0 : index
    %c0_13 = arith.constant 0 : index
    %27 = vector.load %arg5[%c0_12, %c0_13] : memref<1x128xf32, #tpu.memory_space<vmem>>, vector<1x128xf32>
    %28 = vector.broadcast %27 : vector<1x128xf32> to vector<32x128xf32>
    %29 = arith.addf %26, %28 : vector<32x128xf32>
    %c0_14 = arith.constant 0 : index
    %c0_15 = arith.constant 0 : index
    %30 = vector.load %arg6[%c0_14, %c0_15] : memref<32x128xf32, #tpu.memory_space<vmem>>, vector<32x128xf32>
    tpu.vector_store %arg6[%c0_14, %c0_15], %29 {strides = array<i32>} : memref<32x128xf32, #tpu.memory_space<vmem>>, vector<32x128xf32>,
    return
  }
  func.func @transform_0(%arg0: i32) -> (i32, i32) {
    %c0_i32 = arith.constant 0 : i32
    %c0_i32_0 = arith.constant 0 : i32
    %c0_i32_1 = arith.constant 0 : i32
    return %c0_i32, %c0_i32_0 : i32, i32
  }
  func.func @transform_1(%arg0: i32) -> (i32, i32) {
    %c0_i32 = arith.constant 0 : i32
    %c0_i32_0 = arith.constant 0 : i32
    return %c0_i32, %arg0 : i32, i32
  }
  func.func @transform_2(%arg0: i32) -> (i32, i32) {
    %c0_i32 = arith.constant 0 : i32
    %c0_i32_0 = arith.constant 0 : i32
    return %c0_i32, %arg0 : i32, i32
  }
  func.func @transform_3(%arg0: i32) -> (i32, i32) {
    %c0_i32 = arith.constant 0 : i32
    %c0_i32_0 = arith.constant 0 : i32
    return %c0_i32, %arg0 : i32, i32
  }
  func.func @transform_4(%arg0: i32) -> (i32, i32) {
    %c0_i32 = arith.constant 0 : i32
    %c0_i32_0 = arith.constant 0 : i32
    return %c0_i32, %arg0 : i32, i32
  }
  func.func @transform_5(%arg0: i32) -> (i32, i32) {
    %c0_i32 = arith.constant 0 : i32
    %c0_i32_0 = arith.constant 0 : i32
    return %c0_i32, %arg0 : i32, i32
  }
}

</mosaic_0001>

<llo_original>
// kernel: tpu_custom_call.1
$region0: #{tpu_custom_call.1}
  #allocation0 [shape = 'u32[]', space=smem, size = 0x4, offset = 0x4, fixed_abs, tag = 'smem constant byte address 0x4 - core index']
  #allocation1 [shape = 'u32[144,128]{1,0:T(1,128)}', space=vmem, size = 0x12000, scoped, tag = 'internal scratch']
  %s0 = inlined_call_operand.vmem [shape: f32[32,16], index: 0, kind: input, shape index: {}]
  %s1 = inlined_call_operand.vmem [shape: f32[16,128], index: 1, kind: input, shape index: {}]
  %s2 = inlined_call_operand.vmem [shape: f32[1,128], index: 2, kind: input, shape index: {}]
  %s3 = inlined_call_operand.vmem [shape: f32[1,128], index: 3, kind: input, shape index: {}]
  %s4 = inlined_call_operand.vmem [shape: f32[1,128], index: 4, kind: input, shape index: {}]
  %s5 = inlined_call_operand.hbm [shape: f32[32,128], index: 5, kind: output, shape index: {}]
  %s6 = sld [smem:[#allocation0]]
  $region30: #{tpu_custom_call.1} parent=0
    _
  %s8 = ssub.s32 1, %s6
  %s9 = scalar_select 0, %s8, %s6
  $region1: #{tpu_custom_call.1} parent=0
    #allocation2 [shape = 'u8[16384]{0}', space=vmem, size = 0x4000, scoped, tag = 'output window, operand 0, single buffered']
    #allocation3 [shape = 's32[1]{0}', space=sflag, size = 0x4, scoped, tag = 'scoped memory for tpu_custom_call.1']
    %10 = vsyncpa [#allocation3], 0
    // Predicated region
    $region2: #{tpu_custom_call.1} parent=1 // pred_check
      _
    $region3: #{tpu_custom_call.1} parent=1 // pred_check_branch
      %12 = sbr.rel (0) target = $region5
    $region4: #{tpu_custom_call.1} parent=1 // pred_region
      _
    $region5: #{tpu_custom_call.1} parent=1 // pred_fallthru
      _
    // Predicated region
    $region6: #{tpu_custom_call.1} parent=1 // pred_check
      _
    $region7: #{tpu_custom_call.1} parent=1 // pred_check_branch
      %14 = sbr.rel (0) target = $region9
    $region8: #{tpu_custom_call.1} parent=1 // pred_region
      _
    $region9: #{tpu_custom_call.1} parent=1 // pred_fallthru
      _
    // Predicated region
    $region10: #{tpu_custom_call.1} parent=1 // pred_check
      _
    $region11: #{tpu_custom_call.1} parent=1 // pred_check_branch
      %16 = sbr.rel (0) target = $region13
    $region12: #{tpu_custom_call.1} parent=1 // pred_region
      _
    $region13: #{tpu_custom_call.1} parent=1 // pred_fallthru
      _
    // Predicated region
    $region14: #{tpu_custom_call.1} parent=1 // pred_check
      _
    $region15: #{tpu_custom_call.1} parent=1 // pred_check_branch
      %18 = sbr.rel (0) target = $region17
    $region16: #{tpu_custom_call.1} parent=1 // pred_region
      _
    $region17: #{tpu_custom_call.1} parent=1 // pred_fallthru
      _
    // Predicated region
    $region18: #{tpu_custom_call.1} parent=1 // pred_check
      _
    $region19: #{tpu_custom_call.1} parent=1 // pred_check_branch
      %20 = sbr.rel (0) target = $region21
    $region20: #{tpu_custom_call.1} parent=1 // pred_region
      _
    $region21: #{tpu_custom_call.1} parent=1 // pred_fallthru
      _
    %v21 = vld [vmem:[%s0] sm:$0xff]
    %v22 = vld [vmem:[%s0 + $0x8] sm:$0xff]
    %v23 = vld [vmem:[%s0 + $0x10] sm:$0xff]
    %v24 = vld [vmem:[%s0 + $0x18] sm:$0xff]
    %v25 = vld [vmem:[%s1] sm:$0xff]
    %v26 = vld [vmem:[%s1 + $0x8] sm:$0xff]
    %v27 = vld [vmem:[%s2] sm:$0x1]
    %v29 = vlaneseq
    %v30 = vshrl.u32 %v29, 7
    %v31 = vsub.s32 0, %v30
    %v32 = vrot.slane %v27, %v31
    %vm34 = vcmask 130048
    %v36 = vsel %vm34, %v21, 0
    %v39 = vsel %vm34, %v22, 0
    %v42 = vsel %vm34, %v23, 0
    %v45 = vsel %vm34, %v24, 0
    %47 = vmatprep.subr.mxu0 0.0
    %48 = vmatpush1.msra.mxu0 %v25
    %49 = vmatprep.subr.mxu0 0.0
    %50 = vmatpush1.msra.mxu0 %v26
    %51 = vmatprep.subr.mxu0 0.0
    %52 = vmatpush1.msra.mxu0 0.0
    %53 = vmatprep.subr.mxu0 0.0
    %54 = vmatpush1.msra.mxu0 0.0
    %55 = vmatprep.subr.mxu0 0.0
    %56 = vmatpush1.msra.mxu0 0.0
    %57 = vmatprep.subr.mxu0 0.0
    %58 = vmatpush1.msra.mxu0 0.0
    %59 = vmatprep.subr.mxu0 0.0
    %60 = vmatpush1.msra.mxu0 0.0
    %61 = vmatprep.subr.mxu0 0.0
    %62 = vmatpush1.msra.mxu0 0.0
    %63 = vmatprep.subr.mxu0 0.0
    %64 = vmatpush1.msra.mxu0 0.0
    %65 = vmatprep.subr.mxu0 0.0
    %66 = vmatpush1.msra.mxu0 0.0
    %67 = vmatprep.subr.mxu0 0.0
    %68 = vmatpush1.msra.mxu0 0.0
    %69 = vmatprep.subr.mxu0 0.0
    %70 = vmatpush1.msra.mxu0 0.0
    %71 = vmatprep.subr.mxu0 0.0
    %72 = vmatpush1.msra.mxu0 0.0
    %73 = vmatprep.subr.mxu0 0.0
    %74 = vmatpush1.msra.mxu0 0.0
    %75 = vmatprep.subr.mxu0 0.0
    %76 = vmatpush1.msra.mxu0 0.0
    %77 = vmatprep.subr.mxu0 0.0
    %78 = vmatpush1.msra.mxu0 0.0
    %79 = vmatprep.subr.mxu0 0.0
    %80 = vmatpush1.msra.mxu0 0.0
    %81 = vmatprep.subr.mxu0 0.0
    %82 = vmatpush1.msra.mxu0 0.0
    %83 = vmatprep.subr.mxu0 0.0
    %84 = vmatpush1.msra.mxu0 0.0
    %85 = vmatprep.subr.mxu0 0.0
    %86 = vmatpush1.msra.mxu0 0.0
    %87 = vmatprep.subr.mxu0 0.0
    %88 = vmatpush1.msra.mxu0 0.0
    %89 = vmatprep.subr.mxu0 0.0
    %90 = vmatpush1.msra.mxu0 0.0
    %91 = vmatprep.subr.mxu0 0.0
    %92 = vmatpush1.msra.mxu0 0.0
    %93 = vmatprep.subr.mxu0 0.0
    %94 = vmatpush1.msra.mxu0 0.0
    %95 = vmatprep.subr.mxu0 0.0
    %96 = vmatpush1.msra.mxu0 0.0
    %97 = vmatprep.subr.mxu0 0.0
    %98 = vmatpush1.msra.mxu0 0.0
    %99 = vmatprep.subr.mxu0 0.0
    %100 = vmatpush1.msra.mxu0 0.0
    %101 = vmatprep.subr.mxu0 0.0
    %102 = vmatpush1.msra.mxu0 0.0
    %103 = vmatprep.subr.mxu0 0.0
    %104 = vmatpush1.msra.mxu0 0.0
    %105 = vmatprep.subr.mxu0 0.0
    %106 = vmatpush1.msra.mxu0 0.0
    %107 = vmatprep.subr.mxu0 0.0
    %108 = vmatpush1.msra.mxu0 0.0
    %109 = vmatprep.subr.mxu0 0.0
    %110 = vmatpush1.msra.mxu0 0.0
    %111 = vmatprep.mubr.f32.mxu0 0.0
    %112 = vmatmul.mubr.f32.gmra.mrb[0].mxu0 %v36
    %v113 = vpop.f32.mrb[0].mxu0
    %v114 = vadd.f32 %v32, %v113
    %v115 = vpop.f32.mrb[0].mxu0
    %116 = vmatprep.mubr.f32.mxu0 0.0
    %117 = vmatmul.mubr.f32.gmra.mrb[0].mxu0 %v39
    %v118 = vpop.f32.mrb[0].mxu0
    %v119 = vadd.f32 %v32, %v118
    %v120 = vpop.f32.mrb[0].mxu0
    %121 = vmatprep.mubr.f32.mxu0 0.0
    %122 = vmatmul.mubr.f32.gmra.mrb[0].mxu0 %v42
    %v123 = vpop.f32.mrb[0].mxu0
    %v124 = vadd.f32 %v32, %v123
    %v125 = vpop.f32.mrb[0].mxu0
    %126 = vmatprep.mubr.f32.mxu0 0.0
    %127 = vmatmul.mubr.f32.gmra.mrb[0].mxu0 %v45
    %v128 = vpop.f32.mrb[0].mxu0
    %v129 = vadd.f32 %v32, %v128
    %v130 = vpop.f32.mrb[0].mxu0
    %131 = vdwg.mxu0
    %v132 = vadd.f32 %v114, %v119
    %v133 = vadd.f32 %v132, %v124
    %v134 = vadd.f32 %v133, %v129
    %v135 = vrot.slane %v134, 4
    %v136 = vadd.f32 %v134, %v135
    %v137 = vrot.slane %v136, 2
    %v138 = vadd.f32 %v136, %v137
    %v139 = vrot.slane %v138, 1
    %v140 = vadd.f32 %v138, %v139
    %v141 = vrcp.pop 32.0
    %v142 = vmul.f32 %v140, %v141
    %v143 = vsub.f32 %v114, %v142
    %v144 = vsub.f32 %v119, %v142
    %v145 = vsub.f32 %v124, %v142
    %v146 = vsub.f32 %v129, %v142
    %v147 = vmul.f32 %v143, %v143
    %v148 = vmul.f32 %v144, %v144
    %v149 = vmul.f32 %v145, %v145
    %v150 = vmul.f32 %v146, %v146
    %v151 = vadd.f32 %v147, %v148
    %v152 = vadd.f32 %v151, %v149
    %v153 = vadd.f32 %v152, %v150
    %v154 = vrot.slane %v153, 4
    %v155 = vadd.f32 %v153, %v154
    %v156 = vrot.slane %v155, 2
    %v157 = vadd.f32 %v155, %v156
    %v158 = vrot.slane %v157, 1
    %v159 = vadd.f32 %v157, %v158
    %v160 = vmul.f32 %v159, %v141
    %v161 = vadd.f32 %v160, 1e-05
    %v162 = vrsqrt.pop %v161
    %v163 = vmul.f32 %v161, %v162
    %vm164 = vcmp.eq.f32.partialorder %v161, inf
    %v165 = vsel %vm164, %v161, %v163
    %vm166 = vcmp.eq.f32.partialorder %v161, 0.0
    %v167 = vand.u32 %v161, 2147483648
    %v168 = vsel %vm166, %v167, %v165
    %v169 = vrcp.pop %v168
    %v170 = vmul.f32 %v143, %v169
    %v171 = vmul.f32 %v144, %v169
    %v172 = vmul.f32 %v145, %v169
    %v173 = vmul.f32 %v146, %v169
    %v174 = vld [vmem:[%s3] sm:$0x1]
    %v176 = vlaneseq
    %v177 = vshrl.u32 %v176, 7
    %v178 = vsub.s32 0, %v177
    %v179 = vrot.slane %v174, %v178
    %v181 = vmul.f32 %v170, %v179
    %v182 = vmul.f32 %v171, %v179
    %v183 = vmul.f32 %v172, %v179
    %v184 = vmul.f32 %v173, %v179
    %v185 = vld [vmem:[%s4] sm:$0x1]
    %v187 = vlaneseq
    %v188 = vshrl.u32 %v187, 7
    %v189 = vsub.s32 0, %v188
    %v190 = vrot.slane %v185, %v189
    %v192 = vadd.f32 %v181, %v190
    %v193 = vadd.f32 %v182, %v190
    %v194 = vadd.f32 %v183, %v190
    %v195 = vadd.f32 %v184, %v190
    %196 = vst [vmem:[#allocation2] sm:$0xff] %v192
    %197 = vst [vmem:[#allocation2 + $0x8] sm:$0xff] %v193
    %198 = vst [vmem:[#allocation2 + $0x10] sm:$0xff] %v194
    %199 = vst [vmem:[#allocation2 + $0x18] sm:$0xff] %v195
    // Predicated region
    $region22: #{tpu_custom_call.1} parent=1 // pred_check
      _
    $region23: #{tpu_custom_call.1} parent=1 // pred_check_branch
      %201 = sbr.rel (0) target = $region25
    $region24: #{tpu_custom_call.1} parent=1 // pred_region
      %s203 = ssub.s32 512, 512
      %204 = vsyncadd [#allocation3], %s203
      %s205 = sshll.u32 [#allocation2], 4
      %s206 = int_to_ptr.vmem [resolvable:$true] %s205
      %211 = dma.vmem_to_hbm [thread:$0]  %s206, 512, %s5, [#allocation3], 128, 128, 8
    $region25: #{tpu_custom_call.1} parent=1 // pred_fallthru
      _
    // Predicated region
    $region26: #{tpu_custom_call.1} parent=1 // pred_check
      _
    $region27: #{tpu_custom_call.1} parent=1 // pred_check_branch
      %213 = sbr.rel (0) target = $region29
    $region28: #{tpu_custom_call.1} parent=1 // pred_region
      %214 = dma.done [#allocation3], 512
    $region29: #{tpu_custom_call.1} parent=1 // pred_fallthru
      _
    %215 = vsyncpa [#allocation3], 1

</llo_original>
